<compile_context>
chip_gen: v5e
topology: v5e:2x2
jax: 0.10.0
libtpu: 0.0.40
codegen_flags: <defaults>
</compile_context>

<pallas_src>
import jax
import jax.numpy as jnp
from jax.experimental import pallas as pl
from jax.experimental.pallas import tpu as pltpu


def _round_up(n, m):
    return ((n + m - 1) // m) * m


def _critic_kernel(x_ref, y_ref, w1s_ref, w1a_ref, b1_ref, w2_ref, b2_ref,
                   w3_ref, b3_ref, o_ref):
    # fc1 on the split inputs (fuses the concat): bf16 MXU operands, f32 acc,
    # bias + ReLU in f32 (keeps v5e's VPU on its native f32 path).
    h1 = jnp.dot(x_ref[...].astype(jnp.bfloat16), w1s_ref[...],
                 preferred_element_type=jnp.float32)
    h1 = h1 + jnp.dot(y_ref[...].astype(jnp.bfloat16), w1a_ref[...],
                      preferred_element_type=jnp.float32)
    h1 = jnp.maximum(h1 + b1_ref[...], 0.0)

    # fc2 + ReLU.
    h2 = jnp.dot(h1.astype(jnp.bfloat16), w2_ref[...],
                 preferred_element_type=jnp.float32)
    h2 = jnp.maximum(h2 + b2_ref[...], 0.0)

    # fc3 (N = 1): VPU multiply + lane reduce instead of a 1-of-256-column
    # MXU matmul; keeps the MXU/vex slot free for the two wide layers.
    q = jnp.sum(h2 * w3_ref[...], axis=-1, keepdims=True)   # (TILE_B, 1) f32
    o_ref[...] = q + b3_ref[0, 0]                            # b3 scalar (SMEM)


def prepare_kernel_params(params, n_states):
    """One-time: split fc1's weight at the concat boundary, cast matmul
    weights to bf16, and lay fc3's weight out as a (1, H) row for the VPU."""
    w1, b1, w2, b2, w3, b3 = params
    hidden = w2.shape[0]
    w1s = w1[:n_states].astype(jnp.bfloat16)            # [n_states, H]
    w1a = w1[n_states:].astype(jnp.bfloat16)            # [n_actions, H]
    w2b = w2.astype(jnp.bfloat16)                       # [H, H]
    w3r = w3.reshape(1, hidden).astype(jnp.float32)     # [1, H]
    return (w1s, w1a, b1, w2b, b2, w3r, b3)


def critic_forward(x, y, kparams, tile_b=512):
    """x: [B, n_states], y: [B, n_actions] -> Q: [B, 1] (float32)."""
    w1s, w1a, b1, w2, b2, w3, b3 = kparams
    B = x.shape[0]
    n_s, n_a = x.shape[1], y.shape[1]
    H = w2.shape[0]

    # Batch tiling: at most 512 rows per grid step (f32-friendly), at least the
    # 8-row sublane granule; pad the batch so the grid divides evenly.
    tile_b = min(tile_b, _round_up(B, 8))
    b_pad = _round_up(B, tile_b)
    if b_pad != B:
        x = jnp.pad(x, ((0, b_pad - B), (0, 0)))
        y = jnp.pad(y, ((0, b_pad - B), (0, 0)))
    grid = (b_pad // tile_b,)

    flops = 2 * b_pad * ((n_s + n_a) * H + H * H + H)
    bytes_accessed = (b_pad * (n_s + n_a + 1) * 4          # x, y, q
                      + ((n_s + n_a) * H + H * H) * 2      # bf16 weights
                      + (3 * H + 1) * 4)                   # biases + w3 row

    q = pl.pallas_call(
        _critic_kernel,
        out_shape=jax.ShapeDtypeStruct((b_pad, 1), jnp.float32),
        grid=grid,
        in_specs=[
            pl.BlockSpec((tile_b, n_s), lambda i: (i, 0)),       # x tile
            pl.BlockSpec((tile_b, n_a), lambda i: (i, 0)),       # y tile
            pl.BlockSpec((n_s, H), lambda i: (0, 0)),            # w1_s resident
            pl.BlockSpec((n_a, H), lambda i: (0, 0)),            # w1_a resident
            pl.BlockSpec((1, H), lambda i: (0, 0)),              # b1
            pl.BlockSpec((H, H), lambda i: (0, 0)),              # w2 resident
            pl.BlockSpec((1, H), lambda i: (0, 0)),              # b2
            pl.BlockSpec((1, H), lambda i: (0, 0)),              # w3 row
            pl.BlockSpec(memory_space=pltpu.MemorySpace.SMEM),   # b3 scalar
        ],
        out_specs=pl.BlockSpec((tile_b, 1), lambda i: (i, 0)),
        compiler_params=pltpu.CompilerParams(
            dimension_semantics=("parallel",),       # v7x: shard over 2 TCs
            vmem_limit_bytes=32 * 1024 * 1024),      # explicit, safe everywhere
        cost_estimate=pl.CostEstimate(
            flops=flops, transcendentals=0, bytes_accessed=bytes_accessed),
    )(x, y, w1s, w1a, b1, w2, b2, w3, b3)
    return q[:B]


def init_critic_params(key, n_states, n_actions, hidden_dim=256):
    """PyTorch nn.Linear default init + fc3 uniform(-0.003, 0.003).
    Weights stored as [in, out] (transpose of torch's [out, in])."""
    k1, k2, k3, k4, k5, k6 = jax.random.split(key, 6)
    in1 = n_states + n_actions
    bound1 = 1.0 / jnp.sqrt(in1)
    bound2 = 1.0 / jnp.sqrt(hidden_dim)
    init_w = 0.003

    w1 = jax.random.uniform(k1, (in1, hidden_dim), jnp.float32, -bound1, bound1)
    b1 = jax.random.uniform(k2, (1, hidden_dim), jnp.float32, -bound1, bound1)
    w2 = jax.random.uniform(k3, (hidden_dim, hidden_dim), jnp.float32, -bound2, bound2)
    b2 = jax.random.uniform(k4, (1, hidden_dim), jnp.float32, -bound2, bound2)
    w3 = jax.random.uniform(k5, (hidden_dim, 1), jnp.float32, -init_w, init_w)
    b3 = jax.random.uniform(k6, (1, 1), jnp.float32, -init_w, init_w)
    return (w1, b1, w2, b2, w3, b3)


def critic_ref(x, y, params):
    """Pure-JAX f32 reference (matches the PyTorch forward)."""
    w1, b1, w2, b2, w3, b3 = params
    h = jnp.concatenate([x, y], axis=1)
    h = jnp.maximum(h @ w1 + b1, 0.0)
    h = jnp.maximum(h @ w2 + b2, 0.0)
    return h @ w3 + b3


if __name__ == "__main__":
    # --- small smoke test (shapes consistent with the module) --------------
    n_states, n_actions, hidden_dim = 8, 4, 32
    batch = 2

    key = jax.random.PRNGKey(0)
    kx, ky, kp = jax.random.split(key, 3)
    x = jax.random.normal(kx, (batch, n_states), jnp.float32)
    y = jax.random.normal(ky, (batch, n_actions), jnp.float32)
    params = init_critic_params(kp, n_states, n_actions, hidden_dim)
    kparams = prepare_kernel_params(params, n_states)

    q = critic_forward(x, y, kparams)
    jax.block_until_ready(q)
    q_ref = critic_ref(x, y, params)
    assert q.shape == (batch, 1), q.shape
    assert jnp.allclose(q, q_ref, atol=1e-2, rtol=1e-2), (q, q_ref)

    # --- multi-tile / padded-batch path (exercises the grid) ---------------
    n_states2, n_actions2, hidden2, batch2 = 24, 8, 128, 700
    k2x, k2y, k2p = jax.random.split(jax.random.PRNGKey(1), 3)
    x2 = jax.random.normal(k2x, (batch2, n_states2), jnp.float32)
    y2 = jax.random.normal(k2y, (batch2, n_actions2), jnp.float32)
    params2 = init_critic_params(k2p, n_states2, n_actions2, hidden2)
    kparams2 = prepare_kernel_params(params2, n_states2)

    q2 = critic_forward(x2, y2, kparams2)
    jax.block_until_ready(q2)
    q2_ref = critic_ref(x2, y2, params2)
    assert q2.shape == (batch2, 1), q2.shape
    assert jnp.allclose(q2, q2_ref, atol=1e-2, rtol=1e-2), \
        float(jnp.max(jnp.abs(q2 - q2_ref)))

    print("KERNEL_OK")
</pallas_src>

<mosaic_0001>
module attributes {stable_mosaic.version = 11 : i64} {
  func.func @_critic_kernel(%arg0: i32, %arg1: memref<8x8xf32, #tpu.memory_space<vmem>>, %arg2: memref<8x4xf32, #tpu.memory_space<vmem>>, %arg3: memref<8x32xbf16, #tpu.memory_space<vmem>>, %arg4: memref<4x32xbf16, #tpu.memory_space<vmem>>, %arg5: memref<1x32xf32, #tpu.memory_space<vmem>>, %arg6: memref<32x32xbf16, #tpu.memory_space<vmem>>, %arg7: memref<1x32xf32, #tpu.memory_space<vmem>>, %arg8: memref<1x32xf32, #tpu.memory_space<vmem>>, %arg9: memref<1x1xf32, #tpu.memory_space<smem>>, %arg10: memref<8x1xf32, #tpu.memory_space<vmem>>) attributes {dimension_semantics = [#tpu.dimension_semantics<parallel>], iteration_bounds = array<i64: 1>, scalar_prefetch = 0 : i64, scratch_operands = 0 : i64, tpu.core_type = #tpu.core_type<tc>, window_params = [{transform_indices = @transform_0, window_bounds = array<i64: 8, 8>}, {transform_indices = @transform_1, window_bounds = array<i64: 8, 4>}, {pipeline_mode = #tpu.pipeline_mode<synchronous>, transform_indices = @transform_2, window_bounds = array<i64: 8, 32>}, {pipeline_mode = #tpu.pipeline_mode<synchronous>, transform_indices = @transform_3, window_bounds = array<i64: 4, 32>}, {pipeline_mode = #tpu.pipeline_mode<synchronous>, transform_indices = @transform_4, window_bounds = array<i64: 1, 32>}, {pipeline_mode = #tpu.pipeline_mode<synchronous>, transform_indices = @transform_5, window_bounds = array<i64: 32, 32>}, {pipeline_mode = #tpu.pipeline_mode<synchronous>, transform_indices = @transform_6, window_bounds = array<i64: 1, 32>}, {pipeline_mode = #tpu.pipeline_mode<synchronous>, transform_indices = @transform_7, window_bounds = array<i64: 1, 32>}, {transform_indices = @transform_8, window_bounds = array<i64: 1, 1>}, {transform_indices = @transform_9, window_bounds = array<i64: 8, 1>}]} {
    %c0 = arith.constant 0 : index
    %c0_0 = arith.constant 0 : index
    %0 = vector.load %arg1[%c0, %c0_0] : memref<8x8xf32, #tpu.memory_space<vmem>>, vector<8x8xf32>
    %1 = arith.truncf %0 : vector<8x8xf32> to vector<8x8xbf16>
    %c0_1 = arith.constant 0 : index
    %c0_2 = arith.constant 0 : index
    %2 = vector.load %arg3[%c0_1, %c0_2] : memref<8x32xbf16, #tpu.memory_space<vmem>>, vector<8x32xbf16>
    %cst = arith.constant dense<0.000000e+00> : vector<8x32xf32>
    %3 = tpu.matmul %1, %2, %cst {dimension_numbers = #tpu.dot_dimension_numbers<[1], [0], [0], [1], [0, 0, 1, 1], [], []>} : vector<8x8xbf16>, vector<8x32xbf16>, vector<8x32xf32> -> vector<8x32xf32>
    %c0_3 = arith.constant 0 : index
    %c0_4 = arith.constant 0 : index
    %4 = vector.load %arg2[%c0_3, %c0_4] : memref<8x4xf32, #tpu.memory_space<vmem>>, vector<8x4xf32>
    %5 = arith.truncf %4 : vector<8x4xf32> to vector<8x4xbf16>
    %c0_5 = arith.constant 0 : index
    %c0_6 = arith.constant 0 : index
    %6 = vector.load %arg4[%c0_5, %c0_6] : memref<4x32xbf16, #tpu.memory_space<vmem>>, vector<4x32xbf16>
    %cst_7 = arith.constant dense<0.000000e+00> : vector<8x32xf32>
    %7 = tpu.matmul %5, %6, %cst_7 {dimension_numbers = #tpu.dot_dimension_numbers<[1], [0], [0], [1], [0, 0, 1, 1], [], []>} : vector<8x4xbf16>, vector<4x32xbf16>, vector<8x32xf32> -> vector<8x32xf32>
    %8 = arith.addf %3, %7 : vector<8x32xf32>
    %c0_8 = arith.constant 0 : index
    %c0_9 = arith.constant 0 : index
    %9 = vector.load %arg5[%c0_8, %c0_9] : memref<1x32xf32, #tpu.memory_space<vmem>>, vector<1x32xf32>
    %10 = vector.broadcast %9 : vector<1x32xf32> to vector<8x32xf32>
    %11 = arith.addf %8, %10 : vector<8x32xf32>
    %cst_10 = arith.constant 0.000000e+00 : f32
    %12 = vector.broadcast %cst_10 : f32 to vector<8x32xf32>
    %13 = arith.maximumf %11, %12 : vector<8x32xf32>
    %14 = arith.truncf %13 : vector<8x32xf32> to vector<8x32xbf16>
    %c0_11 = arith.constant 0 : index
    %c0_12 = arith.constant 0 : index
    %15 = vector.load %arg6[%c0_11, %c0_12] : memref<32x32xbf16, #tpu.memory_space<vmem>>, vector<32x32xbf16>
    %cst_13 = arith.constant dense<0.000000e+00> : vector<8x32xf32>
    %16 = tpu.matmul %14, %15, %cst_13 {dimension_numbers = #tpu.dot_dimension_numbers<[1], [0], [0], [1], [0, 0, 1, 1], [], []>} : vector<8x32xbf16>, vector<32x32xbf16>, vector<8x32xf32> -> vector<8x32xf32>
    %c0_14 = arith.constant 0 : index
    %c0_15 = arith.constant 0 : index
    %17 = vector.load %arg7[%c0_14, %c0_15] : memref<1x32xf32, #tpu.memory_space<vmem>>, vector<1x32xf32>
    %18 = vector.broadcast %17 : vector<1x32xf32> to vector<8x32xf32>
    %19 = arith.addf %16, %18 : vector<8x32xf32>
    %cst_16 = arith.constant 0.000000e+00 : f32
    %20 = vector.broadcast %cst_16 : f32 to vector<8x32xf32>
    %21 = arith.maximumf %19, %20 : vector<8x32xf32>
    %c0_17 = arith.constant 0 : index
    %c0_18 = arith.constant 0 : index
    %22 = vector.load %arg8[%c0_17, %c0_18] : memref<1x32xf32, #tpu.memory_space<vmem>>, vector<1x32xf32>
    %23 = vector.broadcast %22 : vector<1x32xf32> to vector<8x32xf32>
    %24 = arith.mulf %21, %23 : vector<8x32xf32>
    %cst_19 = arith.constant dense<0.000000e+00> : vector<8xf32>
    %25 = vector.multi_reduction <add>, %24, %cst_19 [1] : vector<8x32xf32> to vector<8xf32>
    %26 = vector.shape_cast %25 : vector<8xf32> to vector<8x1xf32>
    %c0_20 = arith.constant 0 : index
    %c0_21 = arith.constant 0 : index
    %27 = memref.load %arg9[%c0_20, %c0_21] : memref<1x1xf32, #tpu.memory_space<smem>>
    %28 = vector.broadcast %27 : f32 to vector<8x1xf32>
    %29 = arith.addf %26, %28 : vector<8x1xf32>
    %c0_22 = arith.constant 0 : index
    %c0_23 = arith.constant 0 : index
    %30 = vector.load %arg10[%c0_22, %c0_23] : memref<8x1xf32, #tpu.memory_space<vmem>>, vector<8x1xf32>
    tpu.vector_store %arg10[%c0_22, %c0_23], %29 {strides = array<i32>} : memref<8x1xf32, #tpu.memory_space<vmem>>, vector<8x1xf32>,
    return
  }
  func.func @transform_0(%arg0: i32) -> (i32, i32) {
    %c0_i32 = arith.constant 0 : i32
    %c0_i32_0 = arith.constant 0 : i32
    return %arg0, %c0_i32 : i32, i32
  }
  func.func @transform_1(%arg0: i32) -> (i32, i32) {
    %c0_i32 = arith.constant 0 : i32
    %c0_i32_0 = arith.constant 0 : i32
    return %arg0, %c0_i32 : i32, i32
  }
  func.func @transform_2(%arg0: i32) -> (i32, i32) {
    %c0_i32 = arith.constant 0 : i32
    %c0_i32_0 = arith.constant 0 : i32
    %c0_i32_1 = arith.constant 0 : i32
    return %c0_i32, %c0_i32_0 : i32, i32
  }
  func.func @transform_3(%arg0: i32) -> (i32, i32) {
    %c0_i32 = arith.constant 0 : i32
    %c0_i32_0 = arith.constant 0 : i32
    %c0_i32_1 = arith.constant 0 : i32
    return %c0_i32, %c0_i32_0 : i32, i32
  }
  func.func @transform_4(%arg0: i32) -> (i32, i32) {
    %c0_i32 = arith.constant 0 : i32
    %c0_i32_0 = arith.constant 0 : i32
    %c0_i32_1 = arith.constant 0 : i32
    return %c0_i32, %c0_i32_0 : i32, i32
  }
  func.func @transform_5(%arg0: i32) -> (i32, i32) {
    %c0_i32 = arith.constant 0 : i32
    %c0_i32_0 = arith.constant 0 : i32
    %c0_i32_1 = arith.constant 0 : i32
    return %c0_i32, %c0_i32_0 : i32, i32
  }
  func.func @transform_6(%arg0: i32) -> (i32, i32) {
    %c0_i32 = arith.constant 0 : i32
    %c0_i32_0 = arith.constant 0 : i32
    %c0_i32_1 = arith.constant 0 : i32
    return %c0_i32, %c0_i32_0 : i32, i32
  }
  func.func @transform_7(%arg0: i32) -> (i32, i32) {
    %c0_i32 = arith.constant 0 : i32
    %c0_i32_0 = arith.constant 0 : i32
    %c0_i32_1 = arith.constant 0 : i32
    return %c0_i32, %c0_i32_0 : i32, i32
  }
  func.func @transform_8(%arg0: i32) -> (i32, i32) {
    %c0_i32 = arith.constant 0 : i32
    %c0_i32_0 = arith.constant 0 : i32
    %c0_i32_1 = arith.constant 0 : i32
    return %c0_i32, %c0_i32_0 : i32, i32
  }
  func.func @transform_9(%arg0: i32) -> (i32, i32) {
    %c0_i32 = arith.constant 0 : i32
    %c0_i32_0 = arith.constant 0 : i32
    return %arg0, %c0_i32 : i32, i32
  }
}

</mosaic_0001>

<llo_original>
// kernel: tpu_custom_call.1
$region0: #{tpu_custom_call.1}
  #allocation0 [shape = 'u32[]', space=smem, size = 0x4, offset = 0x4, fixed_abs, tag = 'smem constant byte address 0x4 - core index']
  #allocation1 [shape = 'u32[72,128]{1,0:T(1,128)}', space=vmem, size = 0x9000, scoped, tag = 'internal scratch']
  #allocation2 [shape = 'f32[1,1]{1,0:T(1,128)S(6)}', space=smem, size = 0x200, scoped, tag = 'scoped memory for tpu_custom_call.1']
  %s0 = inlined_call_operand.hbm [shape: f32[8,8], index: 0, kind: input, shape index: {}]
  %s1 = inlined_call_operand.vmem [shape: f32[8,4], index: 1, kind: input, shape index: {}]
  %s2 = inlined_call_operand.hbm [shape: bf16[8,32], index: 2, kind: input, shape index: {}]
  %s3 = inlined_call_operand.vmem [shape: bf16[4,32], index: 3, kind: input, shape index: {}]
  %s4 = inlined_call_operand.hbm [shape: f32[1,32], index: 4, kind: input, shape index: {}]
  %s5 = inlined_call_operand.vmem [shape: bf16[32,32], index: 5, kind: input, shape index: {}]
  %s6 = inlined_call_operand.vmem [shape: f32[1,32], index: 6, kind: input, shape index: {}]
  %s7 = inlined_call_operand.vmem [shape: f32[1,32], index: 7, kind: input, shape index: {}]
  %s8 = inlined_call_operand.<no memory space> [shape: f32[1,1], index: 8, kind: input, shape index: {}]
  %s9 = inlined_call_operand.vmem [shape: f32[8,1], index: 9, kind: output, shape index: {}]
  %s10 = sld [smem:[#allocation0]]
  $region58: #{tpu_custom_call.1} parent=0
    _
  %s12 = ssub.s32 1, %s10
  %s13 = scalar_select 0, %s12, %s10
  %14 = sst [smem:[#allocation2]] %s8
  $region1: #{tpu_custom_call.1} parent=0
    #allocation3 [shape = 'u8[4096]{0}', space=vmem, size = 0x1000, scoped, tag = 'input window, operand 0, single buffered']
    #allocation4 [shape = 's32[1]{0}', space=sflag, size = 0x4, scoped, tag = 'scoped memory for tpu_custom_call.1']
    #allocation5 [shape = 'u8[2048]{0}', space=vmem, size = 0x800, scoped, tag = 'input window, operand 2, single buffered']
    #allocation6 [shape = 's32[1]{0}', space=sflag, size = 0x4, scoped, tag = 'scoped memory for tpu_custom_call.1']
    #allocation7 [shape = 'u8[512]{0}', space=vmem, size = 0x400, scoped, tag = 'input window, operand 4, single buffered']
    %15 = vsyncpa [#allocation4], 0
    %16 = vsyncpa [#allocation6], 0
    // Predicated region
    $region2: #{tpu_custom_call.1} parent=1 // pred_check
      _
    $region3: #{tpu_custom_call.1} parent=1 // pred_check_branch
      %18 = sbr.rel (0) target = $region5
    $region4: #{tpu_custom_call.1} parent=1 // pred_region
      %20 = vsyncadd [#allocation4], 0
      %s22 = sshll.u32 %s0, 4
      %s23 = int_to_ptr.hbm [resolvable:$true] %s22
      %s24 = sshll.u32 [#allocation3], 4
      %s25 = int_to_ptr.vmem [resolvable:$true] %s24
      %27 = dma.hbm_to_vmem [thread:$0]  %s23, 128, %s25, [#allocation4]
    $region5: #{tpu_custom_call.1} parent=1 // pred_fallthru
      _
    // Predicated region
    $region6: #{tpu_custom_call.1} parent=1 // pred_check
      _
    $region7: #{tpu_custom_call.1} parent=1 // pred_check_branch
      %29 = sbr.rel (0) target = $region9
    $region8: #{tpu_custom_call.1} parent=1 // pred_region
      _
    $region9: #{tpu_custom_call.1} parent=1 // pred_fallthru
      _
    // Predicated region
    $region10: #{tpu_custom_call.1} parent=1 // pred_check
      _
    $region11: #{tpu_custom_call.1} parent=1 // pred_check_branch
      %31 = sbr.rel (0) target = $region13
    $region12: #{tpu_custom_call.1} parent=1 // pred_region
      %33 = vsyncadd [#allocation6], 0
      %s35 = sshll.u32 %s2, 4
      %s36 = int_to_ptr.hbm [resolvable:$true] %s35
      %s37 = sshll.u32 [#allocation5], 4
      %s38 = int_to_ptr.vmem [resolvable:$true] %s37
      %40 = dma.hbm_to_vmem [thread:$0]  %s36, 64, %s38, [#allocation6]
    $region13: #{tpu_custom_call.1} parent=1 // pred_fallthru
      _
    // Predicated region
    $region14: #{tpu_custom_call.1} parent=1 // pred_check
      _
    $region15: #{tpu_custom_call.1} parent=1 // pred_check_branch
      %42 = sbr.rel (0) target = $region17
    $region16: #{tpu_custom_call.1} parent=1 // pred_region
      _
    $region17: #{tpu_custom_call.1} parent=1 // pred_fallthru
      _
    // Predicated region
    $region18: #{tpu_custom_call.1} parent=1 // pred_check
      _
    $region19: #{tpu_custom_call.1} parent=1 // pred_check_branch
      %44 = sbr.rel (0) target = $region21
    $region20: #{tpu_custom_call.1} parent=1 // pred_region
      %46 = vsyncadd [#allocation6], 0
      %s48 = sshll.u32 %s4, 4
      %s49 = int_to_ptr.hbm [resolvable:$true] %s48
      %s50 = sshll.u32 [#allocation7], 4
      %s51 = int_to_ptr.vmem [resolvable:$true] %s50
      %53 = dma.hbm_to_vmem [thread:$0]  %s49, 16, %s51, [#allocation6]
    $region21: #{tpu_custom_call.1} parent=1 // pred_fallthru
      _
    // Predicated region
    $region22: #{tpu_custom_call.1} parent=1 // pred_check
      _
    $region23: #{tpu_custom_call.1} parent=1 // pred_check_branch
      %55 = sbr.rel (0) target = $region25
    $region24: #{tpu_custom_call.1} parent=1 // pred_region
      _
    $region25: #{tpu_custom_call.1} parent=1 // pred_fallthru
      _
    // Predicated region
    $region26: #{tpu_custom_call.1} parent=1 // pred_check
      _
    $region27: #{tpu_custom_call.1} parent=1 // pred_check_branch
      %57 = sbr.rel (0) target = $region29
    $region28: #{tpu_custom_call.1} parent=1 // pred_region
      _
    $region29: #{tpu_custom_call.1} parent=1 // pred_fallthru
      _
    // Predicated region
    $region30: #{tpu_custom_call.1} parent=1 // pred_check
      _
    $region31: #{tpu_custom_call.1} parent=1 // pred_check_branch
      %59 = sbr.rel (0) target = $region33
    $region32: #{tpu_custom_call.1} parent=1 // pred_region
      _
    $region33: #{tpu_custom_call.1} parent=1 // pred_fallthru
      _
    // Predicated region
    $region34: #{tpu_custom_call.1} parent=1 // pred_check
      _
    $region35: #{tpu_custom_call.1} parent=1 // pred_check_branch
      %61 = sbr.rel (0) target = $region37
    $region36: #{tpu_custom_call.1} parent=1 // pred_region
      _
    $region37: #{tpu_custom_call.1} parent=1 // pred_fallthru
      _
    // Predicated region
    $region38: #{tpu_custom_call.1} parent=1 // pred_check
      _
    $region39: #{tpu_custom_call.1} parent=1 // pred_check_branch
      %63 = sbr.rel (0) target = $region41
    $region40: #{tpu_custom_call.1} parent=1 // pred_region
      %65 = dma.done [#allocation4], 128
    $region41: #{tpu_custom_call.1} parent=1 // pred_fallthru
      _
    // Predicated region
    $region42: #{tpu_custom_call.1} parent=1 // pred_check
      _
    $region43: #{tpu_custom_call.1} parent=1 // pred_check_branch
      %67 = sbr.rel (0) target = $region45
    $region44: #{tpu_custom_call.1} parent=1 // pred_region
      %69 = dma.done [#allocation6], 64
    $region45: #{tpu_custom_call.1} parent=1 // pred_fallthru
      _
    // Predicated region
    $region46: #{tpu_custom_call.1} parent=1 // pred_check
      _
    $region47: #{tpu_custom_call.1} parent=1 // pred_check_branch
      %71 = sbr.rel (0) target = $region49
    $region48: #{tpu_custom_call.1} parent=1 // pred_region
      %73 = dma.done [#allocation6], 16
    $region49: #{tpu_custom_call.1} parent=1 // pred_fallthru
      _
    %v75 = vld [vmem:[#allocation3] sm:$0xff]
    %v76 = vpack.c.bf16 %v75, %v75
    %v77 = vld [vmem:[#allocation5] sm:$0xf]
    %v78 = vld [vmem:[%s1] sm:$0xff]
    %v79 = vpack.c.bf16 %v78, %v78
    %v80 = vld [vmem:[%s3] sm:$0x3]
    %vm81 = vcmask 31744
    %v83 = vsel %vm81, %v79, 0
    %vm85 = vcmask 1041408
    %v87 = vsel %vm85, %v80, 0
    %89 = vmatpush.bf16.msra.mxu0 0
    %90 = vmatpush.bf16.msra.mxu0 0
    %91 = vmatpush.bf16.msra.mxu0 0
    %92 = vmatpush.bf16.msra.mxu0 0
    %93 = vmatpush.bf16.msra.mxu0 0
    %94 = vmatpush.bf16.msra.mxu0 0
    %95 = vmatpush.bf16.msra.mxu0 0
    %96 = vmatpush.bf16.msra.mxu0 %v87
    %97 = vmatmul.bf16.gmra.mxu0 %v83
    %v98 = vpop.f32.mrf.mxu0
    %v99 = vadd.f32 0.0, %v98
    %v100 = vpop.f32.mrf.mxu0
    %101 = vdwg.mxu0
    %vm102 = vcmask 64512
    %v104 = vsel %vm102, %v76, 0
    %vm106 = vcmask 1043456
    %v108 = vsel %vm106, %v77, 0
    %110 = vmatpush.bf16.msra.mxu0 0
    %111 = vmatpush.bf16.msra.mxu0 0
    %112 = vmatpush.bf16.msra.mxu0 0
    %113 = vmatpush.bf16.msra.mxu0 0
    %114 = vmatpush.bf16.msra.mxu0 0
    %115 = vmatpush.bf16.msra.mxu0 0
    %116 = vmatpush.bf16.msra.mxu0 0
    %117 = vmatpush.bf16.msra.mxu0 %v108
    %118 = vmatmul.bf16.gmra.mxu0 %v104
    %v119 = vpop.f32.mrf.mxu0
    %v120 = vadd.f32 %v99, %v119
    %v121 = vpop.f32.mrf.mxu0
    %122 = vdwg.mxu0
    %v123 = vld [vmem:[#allocation7] sm:$0x1]
    %v125 = vperm.slane %v123, 0
    %v127 = vadd.f32 %v120, %v125
    %v128 = vmax.f32 %v127, 0.0
    %v129 = vpack.c.bf16 %v128, %v128
    %v130 = vld [vmem:[%s5] sm:$0xf]
    %v131 = vld [vmem:[%s5 + $0x4] sm:$0xf]
    %v132 = vld [vmem:[%s5 + $0x8] sm:$0xf]
    %v133 = vld [vmem:[%s5 + $0xc] sm:$0xf]
    %v134 = vld [vmem:[%s6] sm:$0x1]
    %v136 = vperm.slane %v134, 0
    %v142 = vunpack.c.l.b16 %v130
    %v143 = vunpack.c.l.b16 %v131
    %v144 = vunpack.c.l.b16 %v132
    %v145 = vunpack.c.l.b16 %v133
    %v146 = vpack.c.b16 %v143, %v142
    %v147 = vpack.c.b16 %v145, %v144
    %vm150 = vcmask 261120
    %v152 = vsel %vm150, %v129, 0
    %154 = vmatpush.bf16.msra.mxu0 0
    %155 = vmatpush.bf16.msra.mxu0 0
    %156 = vmatpush.bf16.msra.mxu0 0
    %157 = vmatpush.bf16.msra.mxu0 0
    %158 = vmatpush.bf16.msra.mxu0 0
    %159 = vmatpush.bf16.msra.mxu0 0
    %160 = vmatpush.bf16.msra.mxu0 %v147
    %161 = vmatpush.bf16.msra.mxu0 %v146
    %162 = vmatmul.bf16.gmra.mxu0 %v152
    %v163 = vpop.f32.mrf.mxu0
    %v164 = vadd.f32 %v136, %v163
    %v165 = vpop.f32.mrf.mxu0
    %166 = vdwg.mxu0
    %v167 = vmax.f32 %v164, 0.0
    %v168 = vld [vmem:[%s7] sm:$0x1]
    %v170 = vperm.slane %v168, 0
    %v172 = vmul.f32 %v167, %v170
    %v173 = vsel %vm150, %v172, 0.0
    %174 = vadd.xlane.f32.xlu0 %v173
    %v175 = vpop.xlane.xlu0 %174
    %s176 = sld [smem:[#allocation2]]
    %v177 = vstv %s176
    %v178 = vadd.f32 %v175, %v177
    %vm179 = vcmask 7168
    %180 = vst.msk [vmem:[%s9] sm:$0xff] %vm179, %v178
    // Predicated region
    $region50: #{tpu_custom_call.1} parent=1 // pred_check
      _
    $region51: #{tpu_custom_call.1} parent=1 // pred_check_branch
      %182 = sbr.rel (0) target = $region53
    $region52: #{tpu_custom_call.1} parent=1 // pred_region
      _
    $region53: #{tpu_custom_call.1} parent=1 // pred_fallthru
      _
    // Predicated region
    $region54: #{tpu_custom_call.1} parent=1 // pred_check
      _
    $region55: #{tpu_custom_call.1} parent=1 // pred_check_branch
      %184 = sbr.rel (0) target = $region57
    $region56: #{tpu_custom_call.1} parent=1 // pred_region
      _
    $region57: #{tpu_custom_call.1} parent=1 // pred_fallthru
      _
    %185 = vsyncpa [#allocation4], 1
    %186 = vsyncpa [#allocation6], 1

</llo_original>
